<compile_context>
chip_gen: v5e
topology: v5e:2x2
jax: 0.10.0
libtpu: 0.0.40
codegen_flags: <defaults>
</compile_context>

<pallas_src>
import functools

import jax
import jax.numpy as jnp
import numpy as np
from jax.experimental import pallas as pl
from jax.experimental.pallas import tpu as pltpu

_VMEM_LIMIT = 32 * 1024 * 1024   # safe across v5e / v6e / v7x scoped VMEM
_TILE_ROWS = 512                 # global-mode row tile (multiple of 8)
_TILE_FRAMES = 256               # masked-mode frame tile (multiple of 8)


def _round_up(n, m):
    return (n + m - 1) // m * m


def _pack_scalars(scalars):
    """Pack a few f32 scalars into a lane-dense (8, 128) tile.

    Scalar k is broadcast across all 128 lanes of sublane k; the wrapper reads
    lane 0.  A full-width store avoids 1-lane masked partial stores.
    """
    sub = jax.lax.broadcasted_iota(jnp.int32, (8, 128), 0)
    out = jnp.zeros((8, 128), jnp.float32)
    for k, s in enumerate(scalars):
        out = jnp.where(sub == k, s.astype(jnp.float32), out)
    return out


# ---------------------------------------------------------------------------
# Kernel 1: fused SC + log-magnitude losses, global mode (len_ratios is None)
#   inputs reshaped to (B*T, F_pad); grid over row tiles; per-block partials.
# ---------------------------------------------------------------------------
def _fused_global_kernel(x_ref, y_ref, out_ref, *, f_valid, n_valid):
    i = pl.program_id(0)
    x = x_ref[...].astype(jnp.float32)       # (tile_rows, F_pad); upcast in-kernel
    y = y_ref[...].astype(jnp.float32)
    diff = y - x                             # pads are 1.0 in both -> diff == 0
    sc_num = jnp.sum(diff * diff)            # ||y - x||_F^2 partial (pads add 0)

    # ||y||_F^2 needs masking: pads are 1.0, not 0.
    lane = jax.lax.broadcasted_iota(jnp.int32, y.shape, 1)
    row = jax.lax.broadcasted_iota(jnp.int32, y.shape, 0) + i * y.shape[0]
    valid = (lane < f_valid) & (row < n_valid)
    sc_den = jnp.sum(jnp.where(valid, y * y, 0.0))

    # |log y - log x|: pads contribute exactly 0 (log 1 - log 1).
    mag = jnp.sum(jnp.abs(jnp.log(y) - jnp.log(x)))

    out_ref[0] = _pack_scalars([sc_num, sc_den, mag])


def _fused_losses_global(x_mag, y_mag, *, tile_rows=_TILE_ROWS):
    B, T, F = x_mag.shape
    N = B * T
    Fp = _round_up(F, 128)
    tr = min(tile_rows, _round_up(N, 8))
    Np = _round_up(N, tr)

    x2 = x_mag.reshape(N, F)
    y2 = y_mag.reshape(N, F)
    if (Np, Fp) != (N, F):
        pad = ((0, Np - N), (0, Fp - F))
        x2 = jnp.pad(x2, pad, constant_values=1.0)
        y2 = jnp.pad(y2, pad, constant_values=1.0)
    nb = Np // tr

    itemsize = int(jnp.dtype(x2.dtype).itemsize)
    cost = pl.CostEstimate(
        flops=int(6 * Np * Fp),
        transcendentals=int(2 * Np * Fp),
        bytes_accessed=int(2 * Np * Fp * itemsize + nb * 8 * 128 * 4),
    )

    kernel = functools.partial(_fused_global_kernel, f_valid=F, n_valid=N)
    partials = pl.pallas_call(
        kernel,
        out_shape=jax.ShapeDtypeStruct((nb, 8, 128), jnp.float32),
        grid_spec=pltpu.PrefetchScalarGridSpec(
            num_scalar_prefetch=0,
            grid=(nb,),
            in_specs=[
                pl.BlockSpec((tr, Fp), lambda i: (i, 0)),
                pl.BlockSpec((tr, Fp), lambda i: (i, 0)),
            ],
            out_specs=pl.BlockSpec((1, 8, 128), lambda i: (i, 0, 0)),
        ),
        compiler_params=pltpu.CompilerParams(
            dimension_semantics=("parallel",),
            vmem_limit_bytes=_VMEM_LIMIT,
        ),
        cost_estimate=cost,
    )(x2, y2)

    sums = jnp.sum(partials[:, :, 0], axis=0)                 # (8,)
    sc_loss = jnp.sqrt(sums[0]) / jnp.sqrt(sums[1])           # ||y-x||_F / ||y||_F
    mag_loss = sums[2] / jnp.float32(N * F)                   # mean |log y - log x|
    return sc_loss, mag_loss


# ---------------------------------------------------------------------------
# Kernel 2: fused SC + log-magnitude losses, length-masked mode
#   grid (B, T_tiles); lens in SMEM via scalar prefetch; per-block partials.
# ---------------------------------------------------------------------------
def _fused_masked_kernel(lens_ref, x_ref, y_ref, out_ref, *, f_valid, t_tile):
    b = pl.program_id(0)
    j = pl.program_id(1)
    x = x_ref[0].astype(jnp.float32)         # (t_tile, F_pad)
    y = y_ref[0].astype(jnp.float32)
    diff = y - x

    lane = jax.lax.broadcasted_iota(jnp.int32, y.shape, 1)
    lane_ok = lane < f_valid

    frame_num = jnp.sum(diff * diff, axis=-1, keepdims=True)                   # (t_tile, 1)
    frame_den = jnp.sum(jnp.where(lane_ok, y * y, 0.0), axis=-1, keepdims=True)
    frame_mag = jnp.sum(jnp.abs(jnp.log(y) - jnp.log(x)), axis=-1, keepdims=True)

    # per-frame spectral-convergence ratio: sqrt(num) * rsqrt(den) (no divide)
    ratio = jnp.sqrt(frame_num) * jax.lax.rsqrt(frame_den)

    t_idx = jax.lax.broadcasted_iota(jnp.int32, frame_num.shape, 0) + j * t_tile
    tmask = t_idx < lens_ref[b]              # keep first lens[b] frames

    out_ref[0, 0] = _pack_scalars([
        jnp.sum(jnp.where(tmask, ratio, 0.0)),
        jnp.sum(jnp.where(tmask, frame_mag, 0.0)),
    ])


def _fused_losses_masked(x_mag, y_mag, len_ratios, *, tile_frames=_TILE_FRAMES):
    B, T, F = x_mag.shape
    lens = jnp.ceil(len_ratios.astype(jnp.float32) * T).astype(jnp.int32)  # (B,)

    Fp = _round_up(F, 128)
    tt = min(tile_frames, _round_up(T, 8))
    Tp = _round_up(T, tt)
    if (Tp, Fp) != (T, F):
        pad = ((0, 0), (0, Tp - T), (0, Fp - F))
        x_mag = jnp.pad(x_mag, pad, constant_values=1.0)
        y_mag = jnp.pad(y_mag, pad, constant_values=1.0)
    nt = Tp // tt

    itemsize = int(jnp.dtype(x_mag.dtype).itemsize)
    cost = pl.CostEstimate(
        flops=int(7 * B * Tp * Fp),
        transcendentals=int(2 * B * Tp * Fp + 2 * B * Tp),
        bytes_accessed=int(2 * B * Tp * Fp * itemsize + B * nt * 8 * 128 * 4),
    )

    kernel = functools.partial(_fused_masked_kernel, f_valid=F, t_tile=tt)
    partials = pl.pallas_call(
        kernel,
        out_shape=jax.ShapeDtypeStruct((B, nt, 8, 128), jnp.float32),
        grid_spec=pltpu.PrefetchScalarGridSpec(
            num_scalar_prefetch=1,                    # lens lands in SMEM
            grid=(B, nt),
            in_specs=[
                pl.BlockSpec((1, tt, Fp), lambda b, j, _lens: (b, j, 0)),
                pl.BlockSpec((1, tt, Fp), lambda b, j, _lens: (b, j, 0)),
            ],
            out_specs=pl.BlockSpec((1, 1, 8, 128), lambda b, j, _lens: (b, j, 0, 0)),
        ),
        compiler_params=pltpu.CompilerParams(
            dimension_semantics=("parallel", "parallel"),
            vmem_limit_bytes=_VMEM_LIMIT,
        ),
        cost_estimate=cost,
    )(lens, x_mag, y_mag)

    sums = jnp.sum(partials[:, :, :, 0], axis=(0, 1))          # (8,)
    denom = jnp.sum(lens).astype(jnp.float32)
    sc_loss = sums[0] / denom
    mag_loss = sums[1] / (denom * jnp.float32(F))
    return sc_loss, mag_loss


def fused_stft_losses(x_mag, y_mag, len_ratios=None):
    """Fused (SpectralConvergenceLoss, LogSTFTMagnitudeLoss) for one resolution."""
    if len_ratios is None:
        return _fused_losses_global(x_mag, y_mag)
    return _fused_losses_masked(x_mag, y_mag, len_ratios)


# ---------------------------------------------------------------------------
# STFT front-end (matches torch.stft defaults: center=True, reflect pad,
# periodic hann window zero-padded to n_fft, onesided, unnormalized) + the
# module's sqrt(clamp(power, 1e-7)) magnitude.
# ---------------------------------------------------------------------------
def _hann_window_periodic(win_length, dtype=jnp.float32):
    n = jnp.arange(win_length, dtype=dtype)
    return 0.5 - 0.5 * jnp.cos(2.0 * jnp.pi * n / win_length)


def stft_magnitude(x, fft_size, hop_size, win_length):
    # TODO(synk): the FFT itself stays in XLA (jnp.fft.rfft); no clean Pallas equivalent.
    pad = fft_size // 2
    xp = jnp.pad(x, ((0, 0), (pad, pad)), mode="reflect")
    win = _hann_window_periodic(win_length, x.dtype)
    left = (fft_size - win_length) // 2
    win = jnp.pad(win, (left, fft_size - win_length - left))
    n_frames = 1 + (xp.shape[1] - fft_size) // hop_size
    idx = jnp.arange(n_frames)[:, None] * hop_size + jnp.arange(fft_size)[None, :]
    frames = xp[:, idx] * win[None, None, :]                  # (B, n_frames, fft)
    spec = jnp.fft.rfft(frames, axis=-1)
    power = spec.real ** 2 + spec.imag ** 2
    return jnp.sqrt(jnp.maximum(power, 1e-7))                 # (B, n_frames, fft//2+1)


def multi_resolution_stft_loss(x, y, len_ratios=None,
                               fft_sizes=(1024, 2048, 512),
                               hop_sizes=(120, 240, 50),
                               win_lengths=(600, 1200, 240)):
    """Forward pass of MultiResolutionSTFTLoss -> (sc_loss, mag_loss)."""
    if x.ndim == 3:                       # (B, #subband, T) -> (B*#subband, T)
        x = x.reshape(-1, x.shape[-1])
        y = y.reshape(-1, y.shape[-1])
    sc_loss = jnp.float32(0.0)
    mag_loss = jnp.float32(0.0)
    for fs, hs, wl in zip(fft_sizes, hop_sizes, win_lengths):
        x_mag = stft_magnitude(x, fs, hs, wl)
        y_mag = stft_magnitude(y, fs, hs, wl)
        sc_l, mag_l = fused_stft_losses(x_mag, y_mag, len_ratios)
        sc_loss = sc_loss + sc_l
        mag_loss = mag_loss + mag_l
    n = len(fft_sizes)
    return sc_loss / n, mag_loss / n


# ---------------------------------------------------------------------------
# Plain-JAX reference (mirrors the PyTorch module) for verification
# ---------------------------------------------------------------------------
def _ref_losses(x_mag, y_mag, len_ratios):
    B, T, F = x_mag.shape
    err = jnp.abs(jnp.log(y_mag) - jnp.log(x_mag))
    if len_ratios is None:
        sc = jnp.linalg.norm(y_mag - x_mag) / jnp.linalg.norm(y_mag)
        return sc, jnp.mean(err)
    lens = jnp.ceil(len_ratios * T).astype(jnp.int32)
    mask = jnp.arange(T)[None, :] < lens[:, None]             # (B, T)
    num = jnp.sqrt(jnp.sum((y_mag - x_mag) ** 2, axis=-1))
    den = jnp.sqrt(jnp.sum(y_mag ** 2, axis=-1))
    sc = jnp.sum(jnp.where(mask, num / den, 0.0)) / jnp.sum(lens)
    mag = jnp.sum(err * mask[..., None]) / (jnp.sum(lens) * F)
    return sc, mag


def _ref_multi_resolution(x, y, len_ratios, fft_sizes, hop_sizes, win_lengths):
    sc, mag = 0.0, 0.0
    for fs, hs, wl in zip(fft_sizes, hop_sizes, win_lengths):
        x_mag = stft_magnitude(x, fs, hs, wl)
        y_mag = stft_magnitude(y, fs, hs, wl)
        s, m = _ref_losses(x_mag, y_mag, len_ratios)
        sc, mag = sc + s, mag + m
    n = len(fft_sizes)
    return sc / n, mag / n


if __name__ == "__main__":
    key = jax.random.PRNGKey(0)
    k1, k2, k3 = jax.random.split(key, 3)

    B, T_sig = 2, 2400
    fft_sizes, hop_sizes, win_lengths = (1024, 2048, 512), (120, 240, 50), (600, 1200, 240)

    x = jax.random.normal(k1, (B, T_sig), dtype=jnp.float32)
    y = jax.random.normal(k2, (B, T_sig), dtype=jnp.float32)
    len_ratios = jax.random.uniform(k3, (B,), dtype=jnp.float32, minval=0.3, maxval=1.0)

    # Mode 1: len_ratios is None
    sc_g, mag_g = multi_resolution_stft_loss(x, y, None, fft_sizes, hop_sizes, win_lengths)
    sc_g = jax.block_until_ready(sc_g)
    mag_g = jax.block_until_ready(mag_g)
    sc_g_ref, mag_g_ref = _ref_multi_resolution(x, y, None, fft_sizes, hop_sizes, win_lengths)
    np.testing.assert_allclose(np.asarray(sc_g), np.asarray(sc_g_ref), rtol=1e-3, atol=1e-5)
    np.testing.assert_allclose(np.asarray(mag_g), np.asarray(mag_g_ref), rtol=1e-3, atol=1e-5)

    # Mode 2: with len_ratios
    sc_m, mag_m = multi_resolution_stft_loss(x, y, len_ratios, fft_sizes, hop_sizes, win_lengths)
    sc_m = jax.block_until_ready(sc_m)
    mag_m = jax.block_until_ready(mag_m)
    sc_m_ref, mag_m_ref = _ref_multi_resolution(x, y, len_ratios, fft_sizes, hop_sizes, win_lengths)
    np.testing.assert_allclose(np.asarray(sc_m), np.asarray(sc_m_ref), rtol=1e-3, atol=1e-5)
    np.testing.assert_allclose(np.asarray(mag_m), np.asarray(mag_m_ref), rtol=1e-3, atol=1e-5)

    print("KERNEL_OK")
</pallas_src>

<mosaic_0001>
module attributes {stable_mosaic.version = 11 : i64} {
  func.func @_fused_global_kernel(%arg0: i32, %arg1: memref<48x640xf32, #tpu.memory_space<vmem>>, %arg2: memref<48x640xf32, #tpu.memory_space<vmem>>, %arg3: memref<1x8x128xf32, #tpu.memory_space<vmem>>) attributes {dimension_semantics = [#tpu.dimension_semantics<parallel>], iteration_bounds = array<i64: 1>, scalar_prefetch = 0 : i64, scratch_operands = 0 : i64, tpu.core_type = #tpu.core_type<tc>, window_params = [{transform_indices = @transform_0, window_bounds = array<i64: 48, 640>}, {transform_indices = @transform_1, window_bounds = array<i64: 48, 640>}, {transform_indices = @transform_2, window_bounds = array<i64: 1, 8, 128>}]} {
    %c0 = arith.constant 0 : index
    %c0_0 = arith.constant 0 : index
    %0 = vector.load %arg1[%c0, %c0_0] : memref<48x640xf32, #tpu.memory_space<vmem>>, vector<48x640xf32>
    %c0_1 = arith.constant 0 : index
    %c0_2 = arith.constant 0 : index
    %1 = vector.load %arg2[%c0_1, %c0_2] : memref<48x640xf32, #tpu.memory_space<vmem>>, vector<48x640xf32>
    %2 = arith.subf %1, %0 : vector<48x640xf32>
    %3 = arith.mulf %2, %2 : vector<48x640xf32>
    %4 = vector.shape_cast %3 : vector<48x640xf32> to vector<1x48x640xf32>
    %cst = arith.constant dense<0.000000e+00> : vector<1xf32>
    %5 = vector.multi_reduction <add>, %4, %cst [1, 2] : vector<1x48x640xf32> to vector<1xf32>
    %6 = vector.shape_cast %5 : vector<1xf32> to vector<1x1x1xf32>
    %7 = vector.extract %6[0, 0, 0] : f32 from vector<1x1x1xf32>
    %8 = tpu.iota {dimensions = array<i32: 1>} : vector<48x640xi32>
    %9 = tpu.iota {dimensions = array<i32: 0>} : vector<48x640xi32>
    %c48_i32 = arith.constant 48 : i32
    %10 = arith.muli %arg0, %c48_i32 : i32
    %11 = vector.broadcast %10 : i32 to vector<48x640xi32>
    %12 = arith.addi %9, %11 : vector<48x640xi32>
    %c513_i32 = arith.constant 513 : i32
    %13 = vector.broadcast %c513_i32 : i32 to vector<48x640xi32>
    %14 = arith.cmpi slt, %8, %13 : vector<48x640xi32>
    %c42_i32 = arith.constant 42 : i32
    %15 = vector.broadcast %c42_i32 : i32 to vector<48x640xi32>
    %16 = arith.cmpi slt, %12, %15 : vector<48x640xi32>
    %17 = arith.andi %14, %16 : vector<48x640xi1>
    %18 = arith.mulf %1, %1 : vector<48x640xf32>
    %cst_3 = arith.constant 0.000000e+00 : f32
    %19 = vector.broadcast %cst_3 : f32 to vector<48x640xf32>
    %20 = arith.select %17, %18, %19 : vector<48x640xi1>, vector<48x640xf32>
    %21 = vector.shape_cast %20 : vector<48x640xf32> to vector<1x48x640xf32>
    %cst_4 = arith.constant dense<0.000000e+00> : vector<1xf32>
    %22 = vector.multi_reduction <add>, %21, %cst_4 [1, 2] : vector<1x48x640xf32> to vector<1xf32>
    %23 = vector.shape_cast %22 : vector<1xf32> to vector<1x1x1xf32>
    %24 = vector.extract %23[0, 0, 0] : f32 from vector<1x1x1xf32>
    %25 = math.log %1 : vector<48x640xf32>
    %26 = math.log %0 : vector<48x640xf32>
    %27 = arith.subf %25, %26 : vector<48x640xf32>
    %28 = math.absf %27 : vector<48x640xf32>
    %29 = vector.shape_cast %28 : vector<48x640xf32> to vector<1x48x640xf32>
    %cst_5 = arith.constant dense<0.000000e+00> : vector<1xf32>
    %30 = vector.multi_reduction <add>, %29, %cst_5 [1, 2] : vector<1x48x640xf32> to vector<1xf32>
    %31 = vector.shape_cast %30 : vector<1xf32> to vector<1x1x1xf32>
    %32 = vector.extract %31[0, 0, 0] : f32 from vector<1x1x1xf32>
    %33 = tpu.iota {dimensions = array<i32: 0>} : vector<8x128xi32>
    %cst_6 = arith.constant 0.000000e+00 : f32
    %34 = vector.broadcast %cst_6 : f32 to vector<8x128xf32>
    %c0_i32 = arith.constant 0 : i32
    %35 = vector.broadcast %c0_i32 : i32 to vector<8x128xi32>
    %36 = arith.cmpi eq, %33, %35 : vector<8x128xi32>
    %37 = vector.broadcast %7 : f32 to vector<8x128xf32>
    %38 = arith.select %36, %37, %34 : vector<8x128xi1>, vector<8x128xf32>
    %c1_i32 = arith.constant 1 : i32
    %39 = vector.broadcast %c1_i32 : i32 to vector<8x128xi32>
    %40 = arith.cmpi eq, %33, %39 : vector<8x128xi32>
    %41 = vector.broadcast %24 : f32 to vector<8x128xf32>
    %42 = arith.select %40, %41, %38 : vector<8x128xi1>, vector<8x128xf32>
    %c2_i32 = arith.constant 2 : i32
    %43 = vector.broadcast %c2_i32 : i32 to vector<8x128xi32>
    %44 = arith.cmpi eq, %33, %43 : vector<8x128xi32>
    %45 = vector.broadcast %32 : f32 to vector<8x128xf32>
    %46 = arith.select %44, %45, %42 : vector<8x128xi1>, vector<8x128xf32>
    %c0_7 = arith.constant 0 : index
    %c0_8 = arith.constant 0 : index
    %c0_9 = arith.constant 0 : index
    %47 = vector.load %arg3[%c0_7, %c0_8, %c0_9] : memref<1x8x128xf32, #tpu.memory_space<vmem>>, vector<1x8x128xf32>
    %48 = vector.shape_cast %47 : vector<1x8x128xf32> to vector<8x128xf32>
    %49 = vector.shape_cast %46 : vector<8x128xf32> to vector<1x8x128xf32>
    tpu.vector_store %arg3[%c0_7, %c0_8, %c0_9], %49 {strides = array<i32>} : memref<1x8x128xf32, #tpu.memory_space<vmem>>, vector<1x8x128xf32>,
    return
  }
  func.func @transform_0(%arg0: i32) -> (i32, i32) {
    %c0_i32 = arith.constant 0 : i32
    %c0_i32_0 = arith.constant 0 : i32
    return %arg0, %c0_i32 : i32, i32
  }
  func.func @transform_1(%arg0: i32) -> (i32, i32) {
    %c0_i32 = arith.constant 0 : i32
    %c0_i32_0 = arith.constant 0 : i32
    return %arg0, %c0_i32 : i32, i32
  }
  func.func @transform_2(%arg0: i32) -> (i32, i32, i32) {
    %c0_i32 = arith.constant 0 : i32
    %c0_i32_0 = arith.constant 0 : i32
    %c0_i32_1 = arith.constant 0 : i32
    return %arg0, %c0_i32, %c0_i32_0 : i32, i32, i32
  }
}

</mosaic_0001>

<llo_original>
// kernel: tpu_custom_call.1
$region0: #{tpu_custom_call.1}
  #allocation0 [shape = 'u32[]', space=smem, size = 0x4, offset = 0x4, fixed_abs, tag = 'smem constant byte address 0x4 - core index']
  #allocation1 [shape = 'u32[72,128]{1,0:T(1,128)}', space=vmem, size = 0x9000, scoped, tag = 'internal scratch']
  %s0 = inlined_call_operand.hbm [shape: f32[48,640], index: 0, kind: input, shape index: {}]
  %s1 = inlined_call_operand.hbm [shape: f32[48,640], index: 1, kind: input, shape index: {}]
  %s2 = inlined_call_operand.hbm [shape: f32[1,8,128], index: 2, kind: output, shape index: {}]
  %s3 = sld [smem:[#allocation0]]
  $region26: #{tpu_custom_call.1} parent=0
    _
  %s5 = ssub.s32 1, %s3
  %s6 = scalar_select 0, %s5, %s3
  $region1: #{tpu_custom_call.1} parent=0
    #allocation2 [shape = 'u8[122880]{0}', space=vmem, size = 0x1e000, scoped, tag = 'input window, operand 0, single buffered']
    #allocation3 [shape = 's32[1]{0}', space=sflag, size = 0x4, scoped, tag = 'scoped memory for tpu_custom_call.1']
    #allocation4 [shape = 's32[1]{0}', space=sflag, size = 0x4, scoped, tag = 'scoped memory for tpu_custom_call.1']
    #allocation5 [shape = 'u8[122880]{0}', space=vmem, size = 0x1e000, scoped, tag = 'input window, operand 1, single buffered']
    #allocation6 [shape = 's32[1]{0}', space=sflag, size = 0x4, scoped, tag = 'scoped memory for tpu_custom_call.1']
    #allocation7 [shape = 'u8[4096]{0}', space=vmem, size = 0x1000, scoped, tag = 'output window, operand 0, single buffered']
    %7 = vsyncpa [#allocation3], 0
    %8 = vsyncpa [#allocation6], 0
    %9 = vsyncpa [#allocation4], 0
    // Predicated region
    $region2: #{tpu_custom_call.1} parent=1 // pred_check
      _
    $region3: #{tpu_custom_call.1} parent=1 // pred_check_branch
      %11 = sbr.rel (0) target = $region5
    $region4: #{tpu_custom_call.1} parent=1 // pred_region
      %13 = vsyncadd [#allocation3], 0
      %s14 = sshll.u32 %s0, 4
      %s15 = int_to_ptr.hbm [resolvable:$true] %s14
      %s16 = sshll.u32 [#allocation2], 4
      %s17 = int_to_ptr.vmem [resolvable:$true] %s16
      %22 = dma.hbm_to_vmem [thread:$0]  %s15, 3840, %s17, [#allocation3], 640, 640, 40
    $region5: #{tpu_custom_call.1} parent=1 // pred_fallthru
      _
    // Predicated region
    $region6: #{tpu_custom_call.1} parent=1 // pred_check
      _
    $region7: #{tpu_custom_call.1} parent=1 // pred_check_branch
      %24 = sbr.rel (0) target = $region9
    $region8: #{tpu_custom_call.1} parent=1 // pred_region
      %26 = vsyncadd [#allocation6], 0
      %s27 = sshll.u32 %s1, 4
      %s28 = int_to_ptr.hbm [resolvable:$true] %s27
      %s29 = sshll.u32 [#allocation5], 4
      %s30 = int_to_ptr.vmem [resolvable:$true] %s29
      %35 = dma.hbm_to_vmem [thread:$0]  %s28, 3840, %s30, [#allocation6], 640, 640, 40
    $region9: #{tpu_custom_call.1} parent=1 // pred_fallthru
      _
    // Predicated region
    $region10: #{tpu_custom_call.1} parent=1 // pred_check
      _
    $region11: #{tpu_custom_call.1} parent=1 // pred_check_branch
      %37 = sbr.rel (0) target = $region13
    $region12: #{tpu_custom_call.1} parent=1 // pred_region
      %39 = dma.done [#allocation3], 3840
    $region13: #{tpu_custom_call.1} parent=1 // pred_fallthru
      _
    // Predicated region
    $region14: #{tpu_custom_call.1} parent=1 // pred_check
      _
    $region15: #{tpu_custom_call.1} parent=1 // pred_check_branch
      %41 = sbr.rel (0) target = $region17
    $region16: #{tpu_custom_call.1} parent=1 // pred_region
      %43 = dma.done [#allocation6], 3840
    $region17: #{tpu_custom_call.1} parent=1 // pred_fallthru
      _
    %v44 = vld [vmem:[#allocation2] sm:$0xff]
    %v45 = vld [vmem:[#allocation2 + $0x8] sm:$0xff]
    %v46 = vld [vmem:[#allocation2 + $0x10] sm:$0xff]
    %v47 = vld [vmem:[#allocation2 + $0x18] sm:$0xff]
    %v48 = vld [vmem:[#allocation2 + $0x20] sm:$0xff]
    %v49 = vld [vmem:[#allocation2 + $0x28] sm:$0xff]
    %v50 = vld [vmem:[#allocation2 + $0x30] sm:$0xff]
    %v51 = vld [vmem:[#allocation2 + $0x38] sm:$0xff]
    %v52 = vld [vmem:[#allocation2 + $0x40] sm:$0xff]
    %v53 = vld [vmem:[#allocation2 + $0x48] sm:$0xff]
    %v54 = vld [vmem:[#allocation2 + $0x50] sm:$0xff]
    %v55 = vld [vmem:[#allocation2 + $0x58] sm:$0xff]
    %v56 = vld [vmem:[#allocation2 + $0x60] sm:$0xff]
    %v57 = vld [vmem:[#allocation2 + $0x68] sm:$0xff]
    %v58 = vld [vmem:[#allocation2 + $0x70] sm:$0xff]
    %v59 = vld [vmem:[#allocation2 + $0x78] sm:$0xff]
    %v60 = vld [vmem:[#allocation2 + $0x80] sm:$0xff]
    %v61 = vld [vmem:[#allocation2 + $0x88] sm:$0xff]
    %v62 = vld [vmem:[#allocation2 + $0x90] sm:$0xff]
    %v63 = vld [vmem:[#allocation2 + $0x98] sm:$0xff]
    %v64 = vld [vmem:[#allocation2 + $0xa0] sm:$0xff]
    %v65 = vld [vmem:[#allocation2 + $0xa8] sm:$0xff]
    %v66 = vld [vmem:[#allocation2 + $0xb0] sm:$0xff]
    %v67 = vld [vmem:[#allocation2 + $0xb8] sm:$0xff]
    %v68 = vld [vmem:[#allocation2 + $0xc0] sm:$0xff]
    %v69 = vld [vmem:[#allocation2 + $0xc8] sm:$0xff]
    %v70 = vld [vmem:[#allocation2 + $0xd0] sm:$0xff]
    %v71 = vld [vmem:[#allocation2 + $0xd8] sm:$0xff]
    %v72 = vld [vmem:[#allocation2 + $0xe0] sm:$0xff]
    %v73 = vld [vmem:[#allocation2 + $0xe8] sm:$0xff]
    %v74 = vld [vmem:[#allocation5] sm:$0xff]
    %v75 = vld [vmem:[#allocation5 + $0x8] sm:$0xff]
    %v76 = vld [vmem:[#allocation5 + $0x10] sm:$0xff]
    %v77 = vld [vmem:[#allocation5 + $0x18] sm:$0xff]
    %v78 = vld [vmem:[#allocation5 + $0x20] sm:$0xff]
    %v79 = vld [vmem:[#allocation5 + $0x28] sm:$0xff]
    %v80 = vld [vmem:[#allocation5 + $0x30] sm:$0xff]
    %v81 = vld [vmem:[#allocation5 + $0x38] sm:$0xff]
    %v82 = vld [vmem:[#allocation5 + $0x40] sm:$0xff]
    %v83 = vld [vmem:[#allocation5 + $0x48] sm:$0xff]
    %v84 = vld [vmem:[#allocation5 + $0x50] sm:$0xff]
    %v85 = vld [vmem:[#allocation5 + $0x58] sm:$0xff]
    %v86 = vld [vmem:[#allocation5 + $0x60] sm:$0xff]
    %v87 = vld [vmem:[#allocation5 + $0x68] sm:$0xff]
    %v88 = vld [vmem:[#allocation5 + $0x70] sm:$0xff]
    %v89 = vld [vmem:[#allocation5 + $0x78] sm:$0xff]
    %v90 = vld [vmem:[#allocation5 + $0x80] sm:$0xff]
    %v91 = vld [vmem:[#allocation5 + $0x88] sm:$0xff]
    %v92 = vld [vmem:[#allocation5 + $0x90] sm:$0xff]
    %v93 = vld [vmem:[#allocation5 + $0x98] sm:$0xff]
    %v94 = vld [vmem:[#allocation5 + $0xa0] sm:$0xff]
    %v95 = vld [vmem:[#allocation5 + $0xa8] sm:$0xff]
    %v96 = vld [vmem:[#allocation5 + $0xb0] sm:$0xff]
    %v97 = vld [vmem:[#allocation5 + $0xb8] sm:$0xff]
    %v98 = vld [vmem:[#allocation5 + $0xc0] sm:$0xff]
    %v99 = vld [vmem:[#allocation5 + $0xc8] sm:$0xff]
    %v100 = vld [vmem:[#allocation5 + $0xd0] sm:$0xff]
    %v101 = vld [vmem:[#allocation5 + $0xd8] sm:$0xff]
    %v102 = vld [vmem:[#allocation5 + $0xe0] sm:$0xff]
    %v103 = vld [vmem:[#allocation5 + $0xe8] sm:$0xff]
    %v104 = vsub.f32 %v74, %v44
    %v105 = vsub.f32 %v75, %v45
    %v106 = vsub.f32 %v76, %v46
    %v107 = vsub.f32 %v77, %v47
    %v108 = vsub.f32 %v78, %v48
    %v109 = vsub.f32 %v79, %v49
    %v110 = vsub.f32 %v80, %v50
    %v111 = vsub.f32 %v81, %v51
    %v112 = vsub.f32 %v82, %v52
    %v113 = vsub.f32 %v83, %v53
    %v114 = vsub.f32 %v84, %v54
    %v115 = vsub.f32 %v85, %v55
    %v116 = vsub.f32 %v86, %v56
    %v117 = vsub.f32 %v87, %v57
    %v118 = vsub.f32 %v88, %v58
    %v119 = vsub.f32 %v89, %v59
    %v120 = vsub.f32 %v90, %v60
    %v121 = vsub.f32 %v91, %v61
    %v122 = vsub.f32 %v92, %v62
    %v123 = vsub.f32 %v93, %v63
    %v124 = vsub.f32 %v94, %v64
    %v125 = vsub.f32 %v95, %v65
    %v126 = vsub.f32 %v96, %v66
    %v127 = vsub.f32 %v97, %v67
    %v128 = vsub.f32 %v98, %v68
    %v129 = vsub.f32 %v99, %v69
    %v130 = vsub.f32 %v100, %v70
    %v131 = vsub.f32 %v101, %v71
    %v132 = vsub.f32 %v102, %v72
    %v133 = vsub.f32 %v103, %v73
    %v134 = vmul.f32 %v104, %v104
    %v135 = vmul.f32 %v105, %v105
    %v136 = vmul.f32 %v106, %v106
    %v137 = vmul.f32 %v107, %v107
    %v138 = vmul.f32 %v108, %v108
    %v139 = vmul.f32 %v109, %v109
    %v140 = vmul.f32 %v110, %v110
    %v141 = vmul.f32 %v111, %v111
    %v142 = vmul.f32 %v112, %v112
    %v143 = vmul.f32 %v113, %v113
    %v144 = vmul.f32 %v114, %v114
    %v145 = vmul.f32 %v115, %v115
    %v146 = vmul.f32 %v116, %v116
    %v147 = vmul.f32 %v117, %v117
    %v148 = vmul.f32 %v118, %v118
    %v149 = vmul.f32 %v119, %v119
    %v150 = vmul.f32 %v120, %v120
    %v151 = vmul.f32 %v121, %v121
    %v152 = vmul.f32 %v122, %v122
    %v153 = vmul.f32 %v123, %v123
    %v154 = vmul.f32 %v124, %v124
    %v155 = vmul.f32 %v125, %v125
    %v156 = vmul.f32 %v126, %v126
    %v157 = vmul.f32 %v127, %v127
    %v158 = vmul.f32 %v128, %v128
    %v159 = vmul.f32 %v129, %v129
    %v160 = vmul.f32 %v130, %v130
    %v161 = vmul.f32 %v131, %v131
    %v162 = vmul.f32 %v132, %v132
    %v163 = vmul.f32 %v133, %v133
    %v164 = vadd.f32 %v134, %v135
    %v165 = vadd.f32 %v164, %v136
    %v166 = vadd.f32 %v165, %v137
    %v167 = vadd.f32 %v166, %v138
    %v168 = vadd.f32 %v167, %v139
    %v169 = vadd.f32 %v168, %v140
    %v170 = vadd.f32 %v169, %v141
    %v171 = vadd.f32 %v170, %v142
    %v172 = vadd.f32 %v171, %v143
    %v173 = vadd.f32 %v172, %v144
    %v174 = vadd.f32 %v173, %v145
    %v175 = vadd.f32 %v174, %v146
    %v176 = vadd.f32 %v175, %v147
    %v177 = vadd.f32 %v176, %v148
    %v178 = vadd.f32 %v177, %v149
    %v179 = vadd.f32 %v178, %v150
    %v180 = vadd.f32 %v179, %v151
    %v181 = vadd.f32 %v180, %v152
    %v182 = vadd.f32 %v181, %v153
    %v183 = vadd.f32 %v182, %v154
    %v184 = vadd.f32 %v183, %v155
    %v185 = vadd.f32 %v184, %v156
    %v186 = vadd.f32 %v185, %v157
    %v187 = vadd.f32 %v186, %v158
    %v188 = vadd.f32 %v187, %v159
    %v189 = vadd.f32 %v188, %v160
    %v190 = vadd.f32 %v189, %v161
    %v191 = vadd.f32 %v190, %v162
    %v192 = vadd.f32 %v191, %v163
    %193 = vadd.xlane.f32.xlu0 %v192
    %v194 = vpop.xlane.xlu0 %193
    %v195 = vrot.slane %v194, 4
    %v196 = vadd.f32 %v194, %v195
    %v197 = vrot.slane %v196, 2
    %v198 = vadd.f32 %v196, %v197
    %v199 = vrot.slane %v198, 1
    %v200 = vadd.f32 %v198, %v199
    %s201 = vtos %v200
    %v202 = vlaneseq
    %v203 = vand.u32 %v202, 127
    %v204 = vadd.s32 %v203, 128
    %v205 = vadd.s32 %v203, 256
    %v206 = vadd.s32 %v203, 384
    %v207 = vadd.s32 %v203, 512
    %v208 = vlaneseq
    %v209 = vshrl.u32 %v208, 7
    %v210 = vadd.s32 %v209, 8
    %v211 = vadd.s32 %v209, 16
    %v212 = vadd.s32 %v209, 24
    %v213 = vadd.s32 %v209, 32
    %v214 = vadd.s32 %v209, 40
    %s215 = smul.u32 0, 48
    %v216 = vstv %s215
    %v217 = vadd.s32 %v209, %v216
    %v218 = vadd.s32 %v210, %v216
    %v219 = vadd.s32 %v211, %v216
    %v220 = vadd.s32 %v212, %v216
    %v221 = vadd.s32 %v213, %v216
    %v222 = vadd.s32 %v214, %v216
    %vm223 = vcmp.lt.s32.totalorder %v203, 513
    %vm224 = vcmp.lt.s32.totalorder %v204, 513
    %vm225 = vcmp.lt.s32.totalorder %v205, 513
    %vm226 = vcmp.lt.s32.totalorder %v206, 513
    %vm227 = vcmp.lt.s32.totalorder %v207, 513
    %vm228 = vcmp.lt.s32.totalorder %v217, 42
    %vm229 = vcmp.lt.s32.totalorder %v218, 42
    %vm230 = vcmp.lt.s32.totalorder %v219, 42
    %vm231 = vcmp.lt.s32.totalorder %v220, 42
    %vm232 = vcmp.lt.s32.totalorder %v221, 42
    %vm233 = vcmp.lt.s32.totalorder %v222, 42
    %vm234 = vmand %vm223, %vm228
    %vm235 = vmand %vm224, %vm228
    %vm236 = vmand %vm225, %vm228
    %vm237 = vmand %vm226, %vm228
    %vm238 = vmand %vm227, %vm228
    %vm239 = vmand %vm223, %vm229
    %vm240 = vmand %vm224, %vm229
    %vm241 = vmand %vm225, %vm229
    %vm242 = vmand %vm226, %vm229
    %vm243 = vmand %vm227, %vm229
    %vm244 = vmand %vm223, %vm230
    %vm245 = vmand %vm224, %vm230
    %vm246 = vmand %vm225, %vm230
    %vm247 = vmand %vm226, %vm230
    %vm248 = vmand %vm227, %vm230
    %vm249 = vmand %vm223, %vm231
    %vm250 = vmand %vm224, %vm231
    %vm251 = vmand %vm225, %vm231
    %vm252 = vmand %vm226, %vm231
    %vm253 = vmand %vm227, %vm231
    %vm254 = vmand %vm223, %vm232
    %vm255 = vmand %vm224, %vm232
    %vm256 = vmand %vm225, %vm232
    %vm257 = vmand %vm226, %vm232
    %vm258 = vmand %vm227, %vm232
    %vm259 = vmand %vm223, %vm233
    %vm260 = vmand %vm224, %vm233
    %vm261 = vmand %vm225, %vm233
    %vm262 = vmand %vm226, %vm233
    %vm263 = vmand %vm227, %vm233
    %v264 = vmul.f32 %v74, %v74
    %v265 = vmul.f32 %v75, %v75
    %v266 = vmul.f32 %v76, %v76
    %v267 = vmul.f32 %v77, %v77
    %v268 = vmul.f32 %v78, %v78
    %v269 = vmul.f32 %v79, %v79
    %v270 = vmul.f32 %v80, %v80
    %v271 = vmul.f32 %v81, %v81
    %v272 = vmul.f32 %v82, %v82
    %v273 = vmul.f32 %v83, %v83
    %v274 = vmul.f32 %v84, %v84
    %v275 = vmul.f32 %v85, %v85
    %v276 = vmul.f32 %v86, %v86
    %v277 = vmul.f32 %v87, %v87
    %v278 = vmul.f32 %v88, %v88
    %v279 = vmul.f32 %v89, %v89
    %v280 = vmul.f32 %v90, %v90
    %v281 = vmul.f32 %v91, %v91
    %v282 = vmul.f32 %v92, %v92
    %v283 = vmul.f32 %v93, %v93
    %v284 = vmul.f32 %v94, %v94
    %v285 = vmul.f32 %v95, %v95
    %v286 = vmul.f32 %v96, %v96
    %v287 = vmul.f32 %v97, %v97
    %v288 = vmul.f32 %v98, %v98
    %v289 = vmul.f32 %v99, %v99
    %v290 = vmul.f32 %v100, %v100
    %v291 = vmul.f32 %v101, %v101
    %v292 = vmul.f32 %v102, %v102
    %v293 = vmul.f32 %v103, %v103
    %v294 = vsel %vm234, %v264, 0.0
    %v295 = vsel %vm235, %v265, 0.0
    %v296 = vsel %vm236, %v266, 0.0
    %v297 = vsel %vm237, %v267, 0.0
    %v298 = vsel %vm238, %v268, 0.0
    %v299 = vsel %vm239, %v269, 0.0
    %v300 = vsel %vm240, %v270, 0.0
    %v301 = vsel %vm241, %v271, 0.0
    %v302 = vsel %vm242, %v272, 0.0
    %v303 = vsel %vm243, %v273, 0.0
    %v304 = vsel %vm244, %v274, 0.0
    %v305 = vsel %vm245, %v275, 0.0
    %v306 = vsel %vm246, %v276, 0.0
    %v307 = vsel %vm247, %v277, 0.0
    %v308 = vsel %vm248, %v278, 0.0
    %v309 = vsel %vm249, %v279, 0.0
    %v310 = vsel %vm250, %v280, 0.0
    %v311 = vsel %vm251, %v281, 0.0
    %v312 = vsel %vm252, %v282, 0.0
    %v313 = vsel %vm253, %v283, 0.0
    %v314 = vsel %vm254, %v284, 0.0
    %v315 = vsel %vm255, %v285, 0.0
    %v316 = vsel %vm256, %v286, 0.0
    %v317 = vsel %vm257, %v287, 0.0
    %v318 = vsel %vm258, %v288, 0.0
    %v319 = vsel %vm259, %v289, 0.0
    %v320 = vsel %vm260, %v290, 0.0
    %v321 = vsel %vm261, %v291, 0.0
    %v322 = vsel %vm262, %v292, 0.0
    %v323 = vsel %vm263, %v293, 0.0
    %v324 = vadd.f32 %v294, %v295
    %v325 = vadd.f32 %v324, %v296
    %v326 = vadd.f32 %v325, %v297
    %v327 = vadd.f32 %v326, %v298
    %v328 = vadd.f32 %v327, %v299
    %v329 = vadd.f32 %v328, %v300
    %v330 = vadd.f32 %v329, %v301
    %v331 = vadd.f32 %v330, %v302
    %v332 = vadd.f32 %v331, %v303
    %v333 = vadd.f32 %v332, %v304
    %v334 = vadd.f32 %v333, %v305
    %v335 = vadd.f32 %v334, %v306
    %v336 = vadd.f32 %v335, %v307
    %v337 = vadd.f32 %v336, %v308
    %v338 = vadd.f32 %v337, %v309
    %v339 = vadd.f32 %v338, %v310
    %v340 = vadd.f32 %v339, %v311
    %v341 = vadd.f32 %v340, %v312
    %v342 = vadd.f32 %v341, %v313
    %v343 = vadd.f32 %v342, %v314
    %v344 = vadd.f32 %v343, %v315
    %v345 = vadd.f32 %v344, %v316
    %v346 = vadd.f32 %v345, %v317
    %v347 = vadd.f32 %v346, %v318
    %v348 = vadd.f32 %v347, %v319
    %v349 = vadd.f32 %v348, %v320
    %v350 = vadd.f32 %v349, %v321
    %v351 = vadd.f32 %v350, %v322
    %v352 = vadd.f32 %v351, %v323
    %353 = vadd.xlane.f32.xlu0 %v352
    %v354 = vpop.xlane.xlu0 %353
    %v355 = vrot.slane %v354, 4
    %v356 = vadd.f32 %v354, %v355
    %v357 = vrot.slane %v356, 2
    %v358 = vadd.f32 %v356, %v357
    %v359 = vrot.slane %v358, 1
    %v360 = vadd.f32 %v358, %v359
    %s361 = vtos %v360
    %v362 = vlog2.pop %v74
    %v363 = vmul.f32 %v362, 0.6931472
    %v364 = vlog2.pop %v75
    %v365 = vmul.f32 %v364, 0.6931472
    %v366 = vlog2.pop %v76
    %v367 = vmul.f32 %v366, 0.6931472
    %v368 = vlog2.pop %v77
    %v369 = vmul.f32 %v368, 0.6931472
    %v370 = vlog2.pop %v78
    %v371 = vmul.f32 %v370, 0.6931472
    %v372 = vlog2.pop %v79
    %v373 = vmul.f32 %v372, 0.6931472
    %v374 = vlog2.pop %v80
    %v375 = vmul.f32 %v374, 0.6931472
    %v376 = vlog2.pop %v81
    %v377 = vmul.f32 %v376, 0.6931472
    %v378 = vlog2.pop %v82
    %v379 = vmul.f32 %v378, 0.6931472
    %v380 = vlog2.pop %v83
    %v381 = vmul.f32 %v380, 0.6931472
    %v382 = vlog2.pop %v84
    %v383 = vmul.f32 %v382, 0.6931472
    %v384 = vlog2.pop %v85
    %v385 = vmul.f32 %v384, 0.6931472
    %v386 = vlog2.pop %v86
    %v387 = vmul.f32 %v386, 0.6931472
    %v388 = vlog2.pop %v87
    %v389 = vmul.f32 %v388, 0.6931472
    %v390 = vlog2.pop %v88
    %v391 = vmul.f32 %v390, 0.6931472
    %v392 = vlog2.pop %v89
    %v393 = vmul.f32 %v392, 0.6931472
    %v394 = vlog2.pop %v90
    %v395 = vmul.f32 %v394, 0.6931472
    %v396 = vlog2.pop %v91
    %v397 = vmul.f32 %v396, 0.6931472
    %v398 = vlog2.pop %v92
    %v399 = vmul.f32 %v398, 0.6931472
    %v400 = vlog2.pop %v93
    %v401 = vmul.f32 %v400, 0.6931472
    %v402 = vlog2.pop %v94
    %v403 = vmul.f32 %v402, 0.6931472
    %v404 = vlog2.pop %v95
    %v405 = vmul.f32 %v404, 0.6931472
    %v406 = vlog2.pop %v96
    %v407 = vmul.f32 %v406, 0.6931472
    %v408 = vlog2.pop %v97
    %v409 = vmul.f32 %v408, 0.6931472
    %v410 = vlog2.pop %v98
    %v411 = vmul.f32 %v410, 0.6931472
    %v412 = vlog2.pop %v99
    %v413 = vmul.f32 %v412, 0.6931472
    %v414 = vlog2.pop %v100
    %v415 = vmul.f32 %v414, 0.6931472
    %v416 = vlog2.pop %v101
    %v417 = vmul.f32 %v416, 0.6931472
    %v418 = vlog2.pop %v102
    %v419 = vmul.f32 %v418, 0.6931472
    %v420 = vlog2.pop %v103
    %v421 = vmul.f32 %v420, 0.6931472
    %v422 = vlog2.pop %v44
    %v423 = vmul.f32 %v422, 0.6931472
    %v424 = vlog2.pop %v45
    %v425 = vmul.f32 %v424, 0.6931472
    %v426 = vlog2.pop %v46
    %v427 = vmul.f32 %v426, 0.6931472
    %v428 = vlog2.pop %v47
    %v429 = vmul.f32 %v428, 0.6931472
    %v430 = vlog2.pop %v48
    %v431 = vmul.f32 %v430, 0.6931472
    %v432 = vlog2.pop %v49
    %v433 = vmul.f32 %v432, 0.6931472
    %v434 = vlog2.pop %v50
    %v435 = vmul.f32 %v434, 0.6931472
    %v436 = vlog2.pop %v51
    %v437 = vmul.f32 %v436, 0.6931472
    %v438 = vlog2.pop %v52
    %v439 = vmul.f32 %v438, 0.6931472
    %v440 = vlog2.pop %v53
    %v441 = vmul.f32 %v440, 0.6931472
    %v442 = vlog2.pop %v54
    %v443 = vmul.f32 %v442, 0.6931472
    %v444 = vlog2.pop %v55
    %v445 = vmul.f32 %v444, 0.6931472
    %v446 = vlog2.pop %v56
    %v447 = vmul.f32 %v446, 0.6931472
    %v448 = vlog2.pop %v57
    %v449 = vmul.f32 %v448, 0.6931472
    %v450 = vlog2.pop %v58
    %v451 = vmul.f32 %v450, 0.6931472
    %v452 = vlog2.pop %v59
    %v453 = vmul.f32 %v452, 0.6931472
    %v454 = vlog2.pop %v60
    %v455 = vmul.f32 %v454, 0.6931472
    %v456 = vlog2.pop %v61
    %v457 = vmul.f32 %v456, 0.6931472
    %v458 = vlog2.pop %v62
    %v459 = vmul.f32 %v458, 0.6931472
    %v460 = vlog2.pop %v63
    %v461 = vmul.f32 %v460, 0.6931472
    %v462 = vlog2.pop %v64
    %v463 = vmul.f32 %v462, 0.6931472
    %v464 = vlog2.pop %v65
    %v465 = vmul.f32 %v464, 0.6931472
    %v466 = vlog2.pop %v66
    %v467 = vmul.f32 %v466, 0.6931472
    %v468 = vlog2.pop %v67
    %v469 = vmul.f32 %v468, 0.6931472
    %v470 = vlog2.pop %v68
    %v471 = vmul.f32 %v470, 0.6931472
    %v472 = vlog2.pop %v69
    %v473 = vmul.f32 %v472, 0.6931472
    %v474 = vlog2.pop %v70
    %v475 = vmul.f32 %v474, 0.6931472
    %v476 = vlog2.pop %v71
    %v477 = vmul.f32 %v476, 0.6931472
    %v478 = vlog2.pop %v72
    %v479 = vmul.f32 %v478, 0.6931472
    %v480 = vlog2.pop %v73
    %v481 = vmul.f32 %v480, 0.6931472
    %v482 = vsub.f32 %v363, %v423
    %v483 = vsub.f32 %v365, %v425
    %v484 = vsub.f32 %v367, %v427
    %v485 = vsub.f32 %v369, %v429
    %v486 = vsub.f32 %v371, %v431
    %v487 = vsub.f32 %v373, %v433
    %v488 = vsub.f32 %v375, %v435
    %v489 = vsub.f32 %v377, %v437
    %v490 = vsub.f32 %v379, %v439
    %v491 = vsub.f32 %v381, %v441
    %v492 = vsub.f32 %v383, %v443
    %v493 = vsub.f32 %v385, %v445
    %v494 = vsub.f32 %v387, %v447
    %v495 = vsub.f32 %v389, %v449
    %v496 = vsub.f32 %v391, %v451
    %v497 = vsub.f32 %v393, %v453
    %v498 = vsub.f32 %v395, %v455
    %v499 = vsub.f32 %v397, %v457
    %v500 = vsub.f32 %v399, %v459
    %v501 = vsub.f32 %v401, %v461
    %v502 = vsub.f32 %v403, %v463
    %v503 = vsub.f32 %v405, %v465
    %v504 = vsub.f32 %v407, %v467
    %v505 = vsub.f32 %v409, %v469
    %v506 = vsub.f32 %v411, %v471
    %v507 = vsub.f32 %v413, %v473
    %v508 = vsub.f32 %v415, %v475
    %v509 = vsub.f32 %v417, %v477
    %v510 = vsub.f32 %v419, %v479
    %v511 = vsub.f32 %v421, %v481
    %v512 = vand.u32 2147483647, %v482
    %v513 = vand.u32 2147483647, %v483
    %v514 = vand.u32 2147483647, %v484
    %v515 = vand.u32 2147483647, %v485
    %v516 = vand.u32 2147483647, %v486
    %v517 = vand.u32 2147483647, %v487
    %v518 = vand.u32 2147483647, %v488
    %v519 = vand.u32 2147483647, %v489
    %v520 = vand.u32 2147483647, %v490
    %v521 = vand.u32 2147483647, %v491
    %v522 = vand.u32 2147483647, %v492
    %v523 = vand.u32 2147483647, %v493
    %v524 = vand.u32 2147483647, %v494
    %v525 = vand.u32 2147483647, %v495
    %v526 = vand.u32 2147483647, %v496
    %v527 = vand.u32 2147483647, %v497
    %v528 = vand.u32 2147483647, %v498
    %v529 = vand.u32 2147483647, %v499
    %v530 = vand.u32 2147483647, %v500
    %v531 = vand.u32 2147483647, %v501
    %v532 = vand.u32 2147483647, %v502
    %v533 = vand.u32 2147483647, %v503
    %v534 = vand.u32 2147483647, %v504
    %v535 = vand.u32 2147483647, %v505
    %v536 = vand.u32 2147483647, %v506
    %v537 = vand.u32 2147483647, %v507
    %v538 = vand.u32 2147483647, %v508
    %v539 = vand.u32 2147483647, %v509
    %v540 = vand.u32 2147483647, %v510
    %v541 = vand.u32 2147483647, %v511
    %v542 = vadd.f32 %v512, %v513
    %v543 = vadd.f32 %v542, %v514
    %v544 = vadd.f32 %v543, %v515
    %v545 = vadd.f32 %v544, %v516
    %v546 = vadd.f32 %v545, %v517
    %v547 = vadd.f32 %v546, %v518
    %v548 = vadd.f32 %v547, %v519
    %v549 = vadd.f32 %v548, %v520
    %v550 = vadd.f32 %v549, %v521
    %v551 = vadd.f32 %v550, %v522
    %v552 = vadd.f32 %v551, %v523
    %v553 = vadd.f32 %v552, %v524
    %v554 = vadd.f32 %v553, %v525
    %v555 = vadd.f32 %v554, %v526
    %v556 = vadd.f32 %v555, %v527
    %v557 = vadd.f32 %v556, %v528
    %v558 = vadd.f32 %v557, %v529
    %v559 = vadd.f32 %v558, %v530
    %v560 = vadd.f32 %v559, %v531
    %v561 = vadd.f32 %v560, %v532
    %v562 = vadd.f32 %v561, %v533
    %v563 = vadd.f32 %v562, %v534
    %v564 = vadd.f32 %v563, %v535
    %v565 = vadd.f32 %v564, %v536
    %v566 = vadd.f32 %v565, %v537
    %v567 = vadd.f32 %v566, %v538
    %v568 = vadd.f32 %v567, %v539
    %v569 = vadd.f32 %v568, %v540
    %v570 = vadd.f32 %v569, %v541
    %571 = vadd.xlane.f32.xlu0 %v570
    %v572 = vpop.xlane.xlu0 %571
    %v573 = vrot.slane %v572, 4
    %v574 = vadd.f32 %v572, %v573
    %v575 = vrot.slane %v574, 2
    %v576 = vadd.f32 %v574, %v575
    %v577 = vrot.slane %v576, 1
    %v578 = vadd.f32 %v576, %v577
    %s579 = vtos %v578
    %vm580 = vcmp.eq.s32.totalorder %v209, 0
    %v581 = vstv %s201
    %v582 = vsel %vm580, %v581, 0.0
    %vm583 = vcmp.eq.s32.totalorder %v209, 1
    %v584 = vstv %s361
    %v585 = vsel %vm583, %v584, %v582
    %vm586 = vcmp.eq.s32.totalorder %v209, 2
    %v587 = vstv %s579
    %v588 = vsel %vm586, %v587, %v585
    %589 = vst [vmem:[#allocation7] sm:$0xff] %v588
    // Predicated region
    $region18: #{tpu_custom_call.1} parent=1 // pred_check
      _
    $region19: #{tpu_custom_call.1} parent=1 // pred_check_branch
      %591 = sbr.rel (0) target = $region21
    $region20: #{tpu_custom_call.1} parent=1 // pred_region
      %593 = vsyncadd [#allocation4], 0
      %s595 = sshll.u32 [#allocation7], 4
      %s596 = int_to_ptr.vmem [resolvable:$true] %s595
      %s597 = sshll.u32 %s2, 4
      %s598 = int_to_ptr.hbm [resolvable:$true] %s597
      %600 = dma.vmem_to_hbm [thread:$0]  %s596, 128, %s598, [#allocation4]
    $region21: #{tpu_custom_call.1} parent=1 // pred_fallthru
      _
    // Predicated region
    $region22: #{tpu_custom_call.1} parent=1 // pred_check
      _
    $region23: #{tpu_custom_call.1} parent=1 // pred_check_branch
      %602 = sbr.rel (0) target = $region25
    $region24: #{tpu_custom_call.1} parent=1 // pred_region
      %604 = dma.done [#allocation4], 128
    $region25: #{tpu_custom_call.1} parent=1 // pred_fallthru
      _
    %605 = vsyncpa [#allocation3], 1
    %606 = vsyncpa [#allocation6], 1
    %607 = vsyncpa [#allocation4], 1

</llo_original>
